<compile_context>
chip_gen: v7x
topology: tpu7x:2x2x1
jax: 0.10.0
libtpu: 0.0.40
codegen_flags: <defaults>
</compile_context>

<pallas_src>
import functools

import numpy as np
import jax
import jax.numpy as jnp
from jax.experimental import pallas as pl
from jax.experimental.pallas import tpu as pltpu


# ----------------------------- kernels ---------------------------------------

def _se_gate(pooled_f32, w1t_ref, b1_ref, w2t_ref, b2_ref):
    """(Bt, C) f32 pooled means -> (Bt, C) f32 sigmoid gate (output dims on lanes)."""
    h = jnp.dot(pooled_f32, w1t_ref[...], preferred_element_type=jnp.float32)
    h = jnp.maximum(h + b1_ref[...], 0.0)                 # Conv2d(C->BN,1) + ReLU
    s = jnp.dot(h, w2t_ref[...], preferred_element_type=jnp.float32)
    return jax.nn.sigmoid(s + b2_ref[...])                # Conv2d(BN->C,1) + Sigmoid


def se_kernel_nchw(x_ref, w1t_ref, b1_ref, w2t_ref, b2_ref, o_ref, *, inv_hw):
    # x_ref: (Bt, C, HW) -- channels on sublanes, flattened spatial on lanes.
    x = x_ref[...]
    # AdaptiveAvgPool2d((1,1)): f32-accumulated mean over spatial (no f32 copy).
    pooled = jnp.sum(x, axis=-1, dtype=jnp.float32) * inv_hw        # (Bt, C)
    s = _se_gate(pooled, w1t_ref, b1_ref, w2t_ref, b2_ref)          # (Bt, C) f32
    # Scale in the input dtype; gate broadcast over lanes (spatial).
    o_ref[...] = (x * s.astype(x.dtype)[:, :, None]).astype(o_ref.dtype)


def se_kernel_nhwc(x_ref, w1t_ref, b1_ref, w2t_ref, b2_ref, o_ref, *, inv_hw):
    # x_ref: (Bt, HW, C) -- channels on lanes (lane-dense loads/stores).
    x = x_ref[...]
    pooled = jnp.sum(x, axis=1, dtype=jnp.float32) * inv_hw         # (Bt, C)
    s = _se_gate(pooled, w1t_ref, b1_ref, w2t_ref, b2_ref)          # (Bt, C) f32
    o_ref[...] = (x * s.astype(x.dtype)[:, None, :]).astype(o_ref.dtype)


# ----------------------------- sizing helpers ---------------------------------

def _vmem_capacity_bytes():
    try:
        return int(pltpu.get_tpu_info().vmem_capacity_bytes)
    except Exception:
        pass
    # Device-kind aware fallback: v5e/v6e have 128 MiB VMEM, v7x has 64 MiB/TC.
    try:
        kind = jax.devices()[0].device_kind.lower()
    except Exception:
        kind = ""
    if "v5" in kind or "v6" in kind:
        return 128 << 20
    return 64 << 20


def _padded_2d_bytes(sub, lane, dtype):
    """Real VMEM footprint of one (sub, lane) tile incl. (pack, 128) layout padding."""
    itemsize = jnp.dtype(dtype).itemsize
    sub_pack = max(8, 32 // itemsize)                     # 8 f32 / 16 bf16 / 32 int8
    sub_p = -(-sub // sub_pack) * sub_pack
    lane_p = -(-lane // 128) * 128
    return sub_p * lane_p * itemsize


def _choose_bt(B, bt_cap):
    """Largest batch tile <= bt_cap giving enough grid steps.

    >= 4 steps (and an even count) when B >= 4 so both v7x TensorCores get a
    pipelined stream; >= 2 steps otherwise. No padding: the last block may be
    partial (garbage-read / masked-write on the leading axis).
    """
    bt_cap = max(1, min(int(bt_cap), B))
    if B == 1:
        return 1, 1
    min_steps = 4 if B >= 4 else 2
    want_even = B >= 4
    for bt in range(bt_cap, 0, -1):
        steps = -(-B // bt)
        if steps < min_steps:
            continue
        if want_even and (steps % 2):
            continue
        return bt, steps
    bt = min(bt_cap, max(1, -(-B // min_steps)))
    return bt, -(-B // bt)


# ----------------------------- wrappers ---------------------------------------

def _se_pallas(x3, w1, b1, w2, b2, *, channels_last):
    B = x3.shape[0]
    if channels_last:
        _, HW, C = x3.shape
        sub, lane = HW, C
    else:
        _, C, HW = x3.shape
        sub, lane = C, HW
    BN = w1.shape[0]
    assert BN >= 1, "bottleneck = int(channel / reduction) must be >= 1"

    dtype = x3.dtype
    itemsize = jnp.dtype(dtype).itemsize

    # ---- VMEM-accurate batch-tile sizing -------------------------------------
    slab = _padded_2d_bytes(sub, lane, dtype)             # one sample's padded block
    w_bytes = (_padded_2d_bytes(C, BN, jnp.float32) +     # w1^T
               _padded_2d_bytes(1, BN, jnp.float32) +     # b1 row
               _padded_2d_bytes(BN, C, jnp.float32) +     # w2^T
               _padded_2d_bytes(1, C, jnp.float32))       # b2 row

    vmem_cap = _vmem_capacity_bytes()
    budget = (vmem_cap * 55) // 100 - w_bytes             # pipelined-block budget
    bt_cap = max(1, budget // (4 * slab))                 # 2 buffers x (in + out)
    Bt, steps = _choose_bt(B, bt_cap)

    block_bytes = Bt * slab
    vmem_limit = 4 * block_bytes + 2 * w_bytes + (4 << 20)
    vmem_limit = int(min(max(vmem_limit, 32 << 20), vmem_cap - (8 << 20)))

    # ---- layout plumbing (no full-tensor pad / slice) -------------------------
    w1t = w1.T.astype(jnp.float32)                        # (C, BN) output dim on lanes
    w2t = w2.T.astype(jnp.float32)                        # (BN, C) output dim on lanes
    b1_row = b1.reshape(1, BN).astype(jnp.float32)
    b2_row = b2.reshape(1, C).astype(jnp.float32)

    if channels_last:
        kernel = functools.partial(se_kernel_nhwc, inv_hw=1.0 / HW)
        x_block = (Bt, HW, C)
    else:
        kernel = functools.partial(se_kernel_nchw, inv_hw=1.0 / HW)
        x_block = (Bt, C, HW)

    cost = pl.CostEstimate(
        flops=4 * B * C * BN + 2 * B * C * HW,
        transcendentals=B * C,
        bytes_accessed=2 * B * C * HW * itemsize + w_bytes,
    )

    return pl.pallas_call(
        kernel,
        out_shape=jax.ShapeDtypeStruct(x3.shape, dtype),
        grid_spec=pltpu.PrefetchScalarGridSpec(
            num_scalar_prefetch=0,
            grid=(steps,),
            in_specs=[
                pl.BlockSpec(x_block, lambda i: (i, 0, 0)),   # x
                pl.BlockSpec((C, BN), lambda i: (0, 0)),      # w1^T (resident)
                pl.BlockSpec((1, BN), lambda i: (0, 0)),      # b1 row
                pl.BlockSpec((BN, C), lambda i: (0, 0)),      # w2^T (resident)
                pl.BlockSpec((1, C), lambda i: (0, 0)),       # b2 row
            ],
            out_specs=pl.BlockSpec(x_block, lambda i: (i, 0, 0)),
        ),
        compiler_params=pltpu.CompilerParams(
            dimension_semantics=("parallel",),                # batch shards across TCs
            vmem_limit_bytes=vmem_limit,
        ),
        cost_estimate=cost,
    )(x3, w1t, b1_row, w2t, b2_row)


def se_layer_2d(x, w1, b1, w2, b2):
    """NCHW entry point. x: (B, C, H, W); w1: (BN, C); b1: (BN,); w2: (C, BN); b2: (C,)."""
    B, C, H, W = x.shape
    out = _se_pallas(x.reshape(B, C, H * W), w1, b1, w2, b2, channels_last=False)
    return out.reshape(B, C, H, W)


def se_layer_2d_nhwc(x, w1, b1, w2, b2):
    """Channels-last entry point (preferred on TPU). x: (B, H, W, C); weights as above."""
    B, H, W, C = x.shape
    out = _se_pallas(x.reshape(B, H * W, C), w1, b1, w2, b2, channels_last=True)
    return out.reshape(B, H, W, C)


def se_layer_2d_reference(x, w1, b1, w2, b2):
    """Pure-JAX reference mirroring the PyTorch forward (NCHW)."""
    pooled = jnp.mean(x.astype(jnp.float32), axis=(2, 3))    # (B, C)
    h = jnp.maximum(pooled @ w1.T + b1, 0.0)                 # (B, BN)
    s = jax.nn.sigmoid(h @ w2.T + b2)                        # (B, C)
    return (x.astype(jnp.float32) * s[:, :, None, None]).astype(x.dtype)


if __name__ == "__main__":
    # Shapes implied by the module: channel >= reduction so bottleneck >= 1.
    B, C, H, W = 4, 32, 8, 8
    reduction = 16
    BN = int(C / reduction)                                  # bottleneck = 2

    key = jax.random.PRNGKey(0)
    kx, kw1, kb1, kw2, kb2 = jax.random.split(key, 5)

    x = jax.random.normal(kx, (B, C, H, W), dtype=jnp.float32)
    # Conv2d(channel, bottleneck, 1) weight (BN, C, 1, 1) -> squeezed (BN, C)
    w1 = jax.random.normal(kw1, (BN, C), dtype=jnp.float32) * 0.1
    b1 = jax.random.normal(kb1, (BN,), dtype=jnp.float32) * 0.1
    # Conv2d(bottleneck, channel, 1) weight (C, BN, 1, 1) -> squeezed (C, BN)
    w2 = jax.random.normal(kw2, (C, BN), dtype=jnp.float32) * 0.1
    b2 = jax.random.normal(kb2, (C,), dtype=jnp.float32) * 0.1

    ref = se_layer_2d_reference(x, w1, b1, w2, b2)

    # NCHW path (matches the PyTorch module's layout).
    out = jax.block_until_ready(se_layer_2d(x, w1, b1, w2, b2))
    np.testing.assert_allclose(np.asarray(out), np.asarray(ref), rtol=1e-5, atol=1e-5)

    # Channels-last path (for producers that already emit NHWC). The transpose
    # below is test-harness only; the kernel itself never transposes.
    x_nhwc = jnp.transpose(x, (0, 2, 3, 1))
    out_nhwc = jax.block_until_ready(se_layer_2d_nhwc(x_nhwc, w1, b1, w2, b2))
    np.testing.assert_allclose(
        np.asarray(jnp.transpose(out_nhwc, (0, 3, 1, 2))), np.asarray(ref),
        rtol=1e-5, atol=1e-5)

    print("KERNEL_OK")
</pallas_src>

<mosaic_0001>
module attributes {stable_mosaic.version = 11 : i64} {
  func.func @se_kernel_nchw(%arg0: i32, %arg1: memref<1x32x64xf32, #tpu.memory_space<vmem>>, %arg2: memref<32x2xf32, #tpu.memory_space<vmem>>, %arg3: memref<1x2xf32, #tpu.memory_space<vmem>>, %arg4: memref<2x32xf32, #tpu.memory_space<vmem>>, %arg5: memref<1x32xf32, #tpu.memory_space<vmem>>, %arg6: memref<1x32x64xf32, #tpu.memory_space<vmem>>) attributes {dimension_semantics = [#tpu.dimension_semantics<parallel>], iteration_bounds = array<i64: 4>, scalar_prefetch = 0 : i64, scratch_operands = 0 : i64, tpu.core_type = #tpu.core_type<tc>, window_params = [{transform_indices = @transform_0, window_bounds = array<i64: 1, 32, 64>}, {pipeline_mode = #tpu.pipeline_mode<synchronous>, transform_indices = @transform_1, window_bounds = array<i64: 32, 2>}, {pipeline_mode = #tpu.pipeline_mode<synchronous>, transform_indices = @transform_2, window_bounds = array<i64: 1, 2>}, {pipeline_mode = #tpu.pipeline_mode<synchronous>, transform_indices = @transform_3, window_bounds = array<i64: 2, 32>}, {pipeline_mode = #tpu.pipeline_mode<synchronous>, transform_indices = @transform_4, window_bounds = array<i64: 1, 32>}, {transform_indices = @transform_5, window_bounds = array<i64: 1, 32, 64>}]} {
    %c0 = arith.constant 0 : index
    %c0_0 = arith.constant 0 : index
    %c0_1 = arith.constant 0 : index
    %0 = vector.load %arg1[%c0, %c0_0, %c0_1] : memref<1x32x64xf32, #tpu.memory_space<vmem>>, vector<1x32x64xf32>
    %cst = arith.constant dense<0.000000e+00> : vector<1x32xf32>
    %1 = vector.multi_reduction <add>, %0, %cst [2] : vector<1x32x64xf32> to vector<1x32xf32>
    %cst_2 = arith.constant 1.562500e-02 : f32
    %2 = vector.broadcast %cst_2 : f32 to vector<1x32xf32>
    %3 = arith.mulf %1, %2 : vector<1x32xf32>
    %c0_3 = arith.constant 0 : index
    %c0_4 = arith.constant 0 : index
    %4 = vector.load %arg2[%c0_3, %c0_4] : memref<32x2xf32, #tpu.memory_space<vmem>>, vector<32x2xf32>
    %cst_5 = arith.constant dense<0.000000e+00> : vector<1x2xf32>
    %5 = tpu.matmul %3, %4, %cst_5 {dimension_numbers = #tpu.dot_dimension_numbers<[1], [0], [0], [1], [0, 0, 1, 1], [], []>} : vector<1x32xf32>, vector<32x2xf32>, vector<1x2xf32> -> vector<1x2xf32>
    %c0_6 = arith.constant 0 : index
    %c0_7 = arith.constant 0 : index
    %6 = vector.load %arg3[%c0_6, %c0_7] : memref<1x2xf32, #tpu.memory_space<vmem>>, vector<1x2xf32>
    %7 = arith.addf %5, %6 : vector<1x2xf32>
    %cst_8 = arith.constant 0.000000e+00 : f32
    %8 = vector.broadcast %cst_8 : f32 to vector<1x2xf32>
    %9 = arith.maximumf %7, %8 : vector<1x2xf32>
    %c0_9 = arith.constant 0 : index
    %c0_10 = arith.constant 0 : index
    %10 = vector.load %arg4[%c0_9, %c0_10] : memref<2x32xf32, #tpu.memory_space<vmem>>, vector<2x32xf32>
    %cst_11 = arith.constant dense<0.000000e+00> : vector<1x32xf32>
    %11 = tpu.matmul %9, %10, %cst_11 {dimension_numbers = #tpu.dot_dimension_numbers<[1], [0], [0], [1], [0, 0, 1, 1], [], []>} : vector<1x2xf32>, vector<2x32xf32>, vector<1x32xf32> -> vector<1x32xf32>
    %c0_12 = arith.constant 0 : index
    %c0_13 = arith.constant 0 : index
    %12 = vector.load %arg5[%c0_12, %c0_13] : memref<1x32xf32, #tpu.memory_space<vmem>>, vector<1x32xf32>
    %13 = arith.addf %11, %12 : vector<1x32xf32>
    %14 = arith.negf %13 : vector<1x32xf32>
    %15 = math.exp %14 : vector<1x32xf32>
    %cst_14 = arith.constant 1.000000e+00 : f32
    %16 = vector.broadcast %cst_14 : f32 to vector<1x32xf32>
    %17 = arith.addf %16, %15 : vector<1x32xf32>
    %18 = arith.divf %16, %17 : vector<1x32xf32>
    %19 = vector.shape_cast %18 : vector<1x32xf32> to vector<1x32x1xf32>
    %20 = vector.broadcast %19 : vector<1x32x1xf32> to vector<1x32x64xf32>
    %21 = arith.mulf %0, %20 : vector<1x32x64xf32>
    %c0_15 = arith.constant 0 : index
    %c0_16 = arith.constant 0 : index
    %c0_17 = arith.constant 0 : index
    %22 = vector.load %arg6[%c0_15, %c0_16, %c0_17] : memref<1x32x64xf32, #tpu.memory_space<vmem>>, vector<1x32x64xf32>
    tpu.vector_store %arg6[%c0_15, %c0_16, %c0_17], %21 {strides = array<i32>} : memref<1x32x64xf32, #tpu.memory_space<vmem>>, vector<1x32x64xf32>,
    return
  }
  func.func @transform_0(%arg0: i32) -> (i32, i32, i32) {
    %c0_i32 = arith.constant 0 : i32
    %c0_i32_0 = arith.constant 0 : i32
    %c0_i32_1 = arith.constant 0 : i32
    return %arg0, %c0_i32, %c0_i32_0 : i32, i32, i32
  }
  func.func @transform_1(%arg0: i32) -> (i32, i32) {
    %c0_i32 = arith.constant 0 : i32
    %c0_i32_0 = arith.constant 0 : i32
    %c0_i32_1 = arith.constant 0 : i32
    return %c0_i32, %c0_i32_0 : i32, i32
  }
  func.func @transform_2(%arg0: i32) -> (i32, i32) {
    %c0_i32 = arith.constant 0 : i32
    %c0_i32_0 = arith.constant 0 : i32
    %c0_i32_1 = arith.constant 0 : i32
    return %c0_i32, %c0_i32_0 : i32, i32
  }
  func.func @transform_3(%arg0: i32) -> (i32, i32) {
    %c0_i32 = arith.constant 0 : i32
    %c0_i32_0 = arith.constant 0 : i32
    %c0_i32_1 = arith.constant 0 : i32
    return %c0_i32, %c0_i32_0 : i32, i32
  }
  func.func @transform_4(%arg0: i32) -> (i32, i32) {
    %c0_i32 = arith.constant 0 : i32
    %c0_i32_0 = arith.constant 0 : i32
    %c0_i32_1 = arith.constant 0 : i32
    return %c0_i32, %c0_i32_0 : i32, i32
  }
  func.func @transform_5(%arg0: i32) -> (i32, i32, i32) {
    %c0_i32 = arith.constant 0 : i32
    %c0_i32_0 = arith.constant 0 : i32
    %c0_i32_1 = arith.constant 0 : i32
    return %arg0, %c0_i32, %c0_i32_0 : i32, i32, i32
  }
}

</mosaic_0001>

<llo_original>
// kernel: tpu_custom_call.1
$region0: #{tpu_custom_call.1}
  #allocation0 [shape = 'u32[]', space=smem, size = 0x4, offset = 0x4, fixed_abs, tag = 'smem constant byte address 0x4 - core index']
  #allocation1 [shape = 'u32[144,128]{1,0:T(1,128)}', space=vmem, size = 0x12000, scoped, tag = 'internal scratch']
  %s0 = inlined_call_operand.hbm [shape: f32[4,32,64], index: 0, kind: input, shape index: {}]
  %s1 = inlined_call_operand.vmem [shape: f32[32,2], index: 1, kind: input, shape index: {}]
  %s2 = inlined_call_operand.vmem [shape: f32[1,2], index: 2, kind: input, shape index: {}]
  %s3 = inlined_call_operand.vmem [shape: f32[2,32], index: 3, kind: input, shape index: {}]
  %s4 = inlined_call_operand.vmem [shape: f32[1,32], index: 4, kind: input, shape index: {}]
  %s5 = inlined_call_operand.hbm [shape: f32[4,32,64], index: 5, kind: output, shape index: {}]
  %s6 = sld [smem:[#allocation0]]
  $region57: #{tpu_custom_call.1} parent=0
    _
  %s8 = ssub.s32 1, %s6
  %s9 = scalar_select 0, %s8, %s6
  $region1: #{tpu_custom_call.1} parent=0
    #allocation2 [shape = 'u8[32768]{0}', space=vmem, size = 0x8000, scoped, tag = 'input window, operand 0']
    #allocation3 [shape = 's32[2]{0}', space=sflag, size = 0x8, scoped, tag = 'scoped memory for tpu_custom_call.1']
    #allocation4 [shape = 's32[2]{0}', space=sflag, size = 0x8, scoped, tag = 'scoped memory for tpu_custom_call.1']
    #allocation5 [shape = 'u8[32768]{0}', space=vmem, size = 0x8000, scoped, tag = 'output window, operand 0']
    %10 = vsyncpa [#allocation3], 0
    %s11 = scalar_lea.sflag [#allocation3], 1
    %12 = vsyncpa %s11, 0
    %13 = vsyncpa [#allocation4], 0
    %s14 = scalar_lea.sflag [#allocation4], 1
    %15 = vsyncpa %s14, 0
    loop: start=0, step=1, limit=6
    $region2: #{tpu_custom_call.1} parent=1 // loop_pre_header
      _
    $region3: #{tpu_custom_call.1} parent=1 // loop_header
      %s17 = sphi 0, %s21
      %p18 = scmp.ge.s32.totalorder %s17, 6
      %s27 = sphi 0, %s29
      %s30 = sphi 0, %s27
      %s31 = sphi 0, %s30
      %s47 = sphi 0, %s31
      %s51 = sphi 0, %s51
      %s53 = sphi 0, %s51
      %s54 = sphi 0, %s53
      %s68 = sphi 0, %s54
      %s72 = sphi 0, %s72
      %s74 = sphi 0, %s72
      %s75 = sphi 0, %s74
      %s89 = sphi 0, %s75
      %s93 = sphi 0, %s93
      %s95 = sphi 0, %s93
      %s96 = sphi 0, %s95
      %s110 = sphi 0, %s96
      %s114 = sphi 0, %s114
      %s116 = sphi 0, %s114
      %s117 = sphi 0, %s116
      %s131 = sphi 0, %s117
      %s137 = sphi 0, %s139
      %s140 = sphi 0, %s137
      %s141 = sphi 0, %s140
      %s157 = sphi 0, %s141
    $region4: #{tpu_custom_call.1} parent=1 // loop_header_branch
      %20 = sbr.rel (%p18) target = $region8
    $region5: #{tpu_custom_call.1} parent=1 // loop_body
      %s22 = ssub.s32 %s17, 1
      %s23 = ssub.s32 %s17, 2
      %s24 = sadd.s32 %s17, 1
      %s25 = ssub.s32 %s17, %s24
      %p26 = scmp.eq.s32.totalorder %s25, 0
      %s28 = sadd.s32 %s27, 1
      %s29 = scalar_select %p26, %s27, %s28
      %p32 = pneg %p26
      %p33 = scmp.eq.s32.totalorder %s17, 3
      %p34 = por %p32, %p33
      %p35 = scmp.ne.s32.totalorder %s27, %s30
      %p36 = scmp.eq.s32.totalorder %s17, 0
      %p37 = por %p35, %p36
      %p38 = scmp.ne.s32.totalorder %s27, %s30
      %p39 = scmp.eq.s32.totalorder %s22, 3
      %p40 = por %p38, %p39
      %p41 = scmp.ne.s32.totalorder %s30, %s31
      %p42 = scmp.eq.s32.totalorder %s22, 0
      %p43 = por %p41, %p42
      %p44 = scmp.ne.s32.totalorder %s30, %s31
      %p45 = scmp.eq.s32.totalorder %s23, 3
      %p46 = por %p44, %p45
      %p48 = scmp.ne.s32.totalorder %s31, %s47
      %p49 = scmp.eq.s32.totalorder %s23, 0
      %p50 = por %p48, %p49
      %s52 = sadd.s32 %s51, 1
      %p55 = scmp.eq.s32.totalorder %s17, 3
      %p56 = scmp.ne.s32.totalorder %s51, %s53
      %p57 = scmp.eq.s32.totalorder %s17, 0
      %p58 = por %p56, %p57
      %p59 = scmp.ne.s32.totalorder %s51, %s53
      %p60 = scmp.eq.s32.totalorder %s22, 3
      %p61 = por %p59, %p60
      %p62 = scmp.ne.s32.totalorder %s53, %s54
      %p63 = scmp.eq.s32.totalorder %s22, 0
      %p64 = por %p62, %p63
      %p65 = scmp.ne.s32.totalorder %s53, %s54
      %p66 = scmp.eq.s32.totalorder %s23, 3
      %p67 = por %p65, %p66
      %p69 = scmp.ne.s32.totalorder %s54, %s68
      %p70 = scmp.eq.s32.totalorder %s23, 0
      %p71 = por %p69, %p70
      %s73 = sadd.s32 %s72, 1
      %p76 = scmp.eq.s32.totalorder %s17, 3
      %p77 = scmp.ne.s32.totalorder %s72, %s74
      %p78 = scmp.eq.s32.totalorder %s17, 0
      %p79 = por %p77, %p78
      %p80 = scmp.ne.s32.totalorder %s72, %s74
      %p81 = scmp.eq.s32.totalorder %s22, 3
      %p82 = por %p80, %p81
      %p83 = scmp.ne.s32.totalorder %s74, %s75
      %p84 = scmp.eq.s32.totalorder %s22, 0
      %p85 = por %p83, %p84
      %p86 = scmp.ne.s32.totalorder %s74, %s75
      %p87 = scmp.eq.s32.totalorder %s23, 3
      %p88 = por %p86, %p87
      %p90 = scmp.ne.s32.totalorder %s75, %s89
      %p91 = scmp.eq.s32.totalorder %s23, 0
      %p92 = por %p90, %p91
      %s94 = sadd.s32 %s93, 1
      %p97 = scmp.eq.s32.totalorder %s17, 3
      %p98 = scmp.ne.s32.totalorder %s93, %s95
      %p99 = scmp.eq.s32.totalorder %s17, 0
      %p100 = por %p98, %p99
      %p101 = scmp.ne.s32.totalorder %s93, %s95
      %p102 = scmp.eq.s32.totalorder %s22, 3
      %p103 = por %p101, %p102
      %p104 = scmp.ne.s32.totalorder %s95, %s96
      %p105 = scmp.eq.s32.totalorder %s22, 0
      %p106 = por %p104, %p105
      %p107 = scmp.ne.s32.totalorder %s95, %s96
      %p108 = scmp.eq.s32.totalorder %s23, 3
      %p109 = por %p107, %p108
      %p111 = scmp.ne.s32.totalorder %s96, %s110
      %p112 = scmp.eq.s32.totalorder %s23, 0
      %p113 = por %p111, %p112
      %s115 = sadd.s32 %s114, 1
      %p118 = scmp.eq.s32.totalorder %s17, 3
      %p119 = scmp.ne.s32.totalorder %s114, %s116
      %p120 = scmp.eq.s32.totalorder %s17, 0
      %p121 = por %p119, %p120
      %p122 = scmp.ne.s32.totalorder %s114, %s116
      %p123 = scmp.eq.s32.totalorder %s22, 3
      %p124 = por %p122, %p123
      %p125 = scmp.ne.s32.totalorder %s116, %s117
      %p126 = scmp.eq.s32.totalorder %s22, 0
      %p127 = por %p125, %p126
      %p128 = scmp.ne.s32.totalorder %s116, %s117
      %p129 = scmp.eq.s32.totalorder %s23, 3
      %p130 = por %p128, %p129
      %p132 = scmp.ne.s32.totalorder %s117, %s131
      %p133 = scmp.eq.s32.totalorder %s23, 0
      %p134 = por %p132, %p133
      %s135 = ssub.s32 %s17, %s24
      %p136 = scmp.eq.s32.totalorder %s135, 0
      %s138 = sadd.s32 %s137, 1
      %s139 = scalar_select %p136, %s137, %s138
      %p142 = pneg %p136
      %p143 = scmp.eq.s32.totalorder %s17, 3
      %p144 = por %p142, %p143
      %p145 = scmp.ne.s32.totalorder %s137, %s140
      %p146 = scmp.eq.s32.totalorder %s17, 0
      %p147 = por %p145, %p146
      %p148 = scmp.ne.s32.totalorder %s137, %s140
      %p149 = scmp.eq.s32.totalorder %s22, 3
      %p150 = por %p148, %p149
      %p151 = scmp.ne.s32.totalorder %s140, %s141
      %p152 = scmp.eq.s32.totalorder %s22, 0
      %p153 = por %p151, %p152
      %p154 = scmp.ne.s32.totalorder %s140, %s141
      %p155 = scmp.eq.s32.totalorder %s23, 3
      %p156 = por %p154, %p155
      %p158 = scmp.ne.s32.totalorder %s141, %s157
      %p159 = scmp.eq.s32.totalorder %s23, 0
      %p160 = por %p158, %p159
      %p161 = scmp.le.s32.totalorder 1, %s17
      %p162 = scmp.lt.s32.totalorder %s17, 5
      %p163 = pnand %p161, %p162
      %p164 = pneg %p163
      // Predicated region
      $region9: #{tpu_custom_call.1} parent=5 // pred_check
        _
      $region10: #{tpu_custom_call.1} parent=5 // pred_check_branch
        %166 = sbr.rel (%p163) target = $region12
      $region11: #{tpu_custom_call.1} parent=5 // pred_region
        %s167 = ssub.s32 %s17, 1
        // Predicated region
        $region13: #{tpu_custom_call.1} parent=11 // pred_check
          %p168 = pneg %p64
        $region14: #{tpu_custom_call.1} parent=11 // pred_check_branch
          %170 = sbr.rel (%p168) target = $region16
        $region15: #{tpu_custom_call.1} parent=11 // pred_region
          _
        $region16: #{tpu_custom_call.1} parent=11 // pred_fallthru
          _
        // Predicated region
        $region17: #{tpu_custom_call.1} parent=11 // pred_check
          %p171 = pneg %p85
        $region18: #{tpu_custom_call.1} parent=11 // pred_check_branch
          %173 = sbr.rel (%p171) target = $region20
        $region19: #{tpu_custom_call.1} parent=11 // pred_region
          _
        $region20: #{tpu_custom_call.1} parent=11 // pred_fallthru
          _
        // Predicated region
        $region21: #{tpu_custom_call.1} parent=11 // pred_check
          %p174 = pneg %p106
        $region22: #{tpu_custom_call.1} parent=11 // pred_check_branch
          %176 = sbr.rel (%p174) target = $region24
        $region23: #{tpu_custom_call.1} parent=11 // pred_region
          _
        $region24: #{tpu_custom_call.1} parent=11 // pred_fallthru
          _
        // Predicated region
        $region25: #{tpu_custom_call.1} parent=11 // pred_check
          %p177 = pneg %p127
        $region26: #{tpu_custom_call.1} parent=11 // pred_check_branch
          %179 = sbr.rel (%p177) target = $region28
        $region27: #{tpu_custom_call.1} parent=11 // pred_region
          _
        $region28: #{tpu_custom_call.1} parent=11 // pred_fallthru
          _
      $region12: #{tpu_custom_call.1} parent=5 // pred_fallthru
        _
      %p180 = scmp.lt.s32.totalorder %s17, 4
      // Predicated region
      $region29: #{tpu_custom_call.1} parent=5 // pred_check
        %p181 = pneg %p180
      $region30: #{tpu_custom_call.1} parent=5 // pred_check_branch
        %183 = sbr.rel (%p181) target = $region32
      $region31: #{tpu_custom_call.1} parent=5 // pred_region
        // Predicated region
        $region33: #{tpu_custom_call.1} parent=31 // pred_check
          %p184 = pneg %p37
        $region34: #{tpu_custom_call.1} parent=31 // pred_check_branch
          %186 = sbr.rel (%p184) target = $region36
        $region35: #{tpu_custom_call.1} parent=31 // pred_region
          %s187 = sand.u32 %s27, 1
          %s188 = scalar_lea.sflag [#allocation3], %s187
          %s189 = sand.u32 %s27, 1
          %s190 = smul.addr %s189, 32
          %s191 = scalar_lea.vmem [#allocation2], %s190
          %s193 = ssub.s32 512, 512
          %194 = vsyncadd %s188, %s193
          %s195 = smul.addr %s17, 4
          %s196 = smul.addr %s195, 128
          %s197 = scalar_lea.hbm %s0, %s196
          %s198 = sshll.u32 %s191, 4
          %s199 = int_to_ptr.vmem [resolvable:$true] %s198
          %204 = dma.hbm_to_vmem [thread:$0]  %s197, 512, %s199, %s188, 128, 128, 8
        $region36: #{tpu_custom_call.1} parent=31 // pred_fallthru
          _
      $region32: #{tpu_custom_call.1} parent=5 // pred_fallthru
        _
      %p205 = scmp.le.s32.totalorder 1, %s17
      %p206 = scmp.lt.s32.totalorder %s17, 5
      %p207 = pnand %p205, %p206
      %p208 = pneg %p207
      // Predicated region
      $region37: #{tpu_custom_call.1} parent=5 // pred_check
        _
      $region38: #{tpu_custom_call.1} parent=5 // pred_check_branch
        %210 = sbr.rel (%p207) target = $region40
      $region39: #{tpu_custom_call.1} parent=5 // pred_region
        %s211 = ssub.s32 %s17, 1
        %s212 = sand.u32 %s30, 1
        %s213 = scalar_lea.sflag [#allocation3], %s212
        %s214 = sand.u32 %s30, 1
        %s215 = smul.addr %s214, 32
        %s216 = scalar_lea.vmem [#allocation2], %s215
        // Predicated region
        $region41: #{tpu_custom_call.1} parent=39 // pred_check
          %p217 = pneg %p43
        $region42: #{tpu_custom_call.1} parent=39 // pred_check_branch
          %219 = sbr.rel (%p217) target = $region44
        $region43: #{tpu_custom_call.1} parent=39 // pred_region
          %220 = dma.done %s213, 512
        $region44: #{tpu_custom_call.1} parent=39 // pred_fallthru
          _
        %s221 = sand.u32 %s30, 1
        %s222 = scalar_lea.sflag [#allocation3], %s221
        %s223 = sand.u32 %s30, 1
        %s224 = smul.addr %s223, 32
        %s225 = scalar_lea.vmem [#allocation2], %s224
        %p226 = pneg %p43
        %p227 = pneg %p40
        %p228 = pneg %p64
        %p229 = pneg %p61
        %p230 = pneg %p85
        %p231 = pneg %p82
        %p232 = pneg %p106
        %p233 = pneg %p103
        %p234 = pneg %p127
        %p235 = pneg %p124
        %p236 = pneg %p153
        %p237 = pneg %p150
        %s238 = sand.u32 %s140, 1
        %s239 = scalar_lea.sflag [#allocation4], %s238
        %s240 = sand.u32 %s140, 1
        %s241 = smul.addr %s240, 32
        %s242 = scalar_lea.vmem [#allocation5], %s241
        %v243 = vld [vmem:[%s216] sm:$0xff]
        %v244 = vld [vmem:[%s216 + $0x8] sm:$0xff]
        %v245 = vld [vmem:[%s216 + $0x10] sm:$0xff]
        %v246 = vld [vmem:[%s216 + $0x18] sm:$0xff]
        %vm247 = vcmask 523264
        %v248 = vsel %vm247, %v243, 0.0
        %249 = vadd.xlane.f32.xlu0 %v248
        %v250 = vpop.xlane.xlu0 %249
        %v251 = vsel %vm247, %v244, 0.0
        %252 = vadd.xlane.f32.xlu0 %v251
        %v253 = vpop.xlane.xlu0 %252
        %v254 = vsel %vm247, %v245, 0.0
        %255 = vadd.xlane.f32.xlu0 %v254
        %v256 = vpop.xlane.xlu0 %255
        %v257 = vsel %vm247, %v246, 0.0
        %258 = vadd.xlane.f32.xlu0 %v257
        %v259 = vpop.xlane.xlu0 %258
        %v260 = vmul.f32 %v250, 0.015625
        %v261 = vmul.f32 %v253, 0.015625
        %v262 = vmul.f32 %v256, 0.015625
        %v263 = vmul.f32 %v259, 0.015625
        %v264 = vld [vmem:[%s1] sm:$0xff]
        %v265 = vld [vmem:[%s1 + $0x8] sm:$0xff]
        %v266 = vld [vmem:[%s1 + $0x10] sm:$0xff]
        %v267 = vld [vmem:[%s1 + $0x18] sm:$0xff]
        %v268 = vld [vmem:[%s2] sm:$0x1]
        %v273 = vlaneseq
        %v274 = vand.u32 %v273, 127
        %v275 = vlaneseq
        %v276 = vshrl.u32 %v275, 7
        %v277 = vsub.s32 %v274, %v276
        %v278 = vrot.slane %v260, %v277
        %v279 = vadd.s32 %v274, 4294967288
        %v280 = vlaneseq
        %v281 = vshrl.u32 %v280, 7
        %v282 = vsub.s32 %v279, %v281
        %v283 = vrot.slane %v261, %v282
        %vm284 = vcmask 130112
        %v285 = vsel %vm284, %v283, %v278
        %v286 = vadd.s32 %v274, 4294967280
        %v287 = vlaneseq
        %v288 = vshrl.u32 %v287, 7
        %v289 = vsub.s32 %v286, %v288
        %v290 = vrot.slane %v262, %v289
        %vm291 = vcmask 195712
        %v292 = vsel %vm291, %v290, %v285
        %v293 = vadd.s32 %v274, 4294967272
        %v294 = vlaneseq
        %v295 = vshrl.u32 %v294, 7
        %v296 = vsub.s32 %v293, %v295
        %v297 = vrot.slane %v263, %v296
        %vm298 = vcmask 261312
        %v299 = vsel %vm298, %v297, %v292
        %vm300 = vcmask 261120
        %v301 = vsel %vm300, %v299, 0
        %303 = vmatprep.subr.mxu0 0.0
        %304 = vmatpush1.msra.mxu0 %v264
        %305 = vmatprep.subr.mxu0 0.0
        %306 = vmatpush1.msra.mxu0 %v265
        %307 = vmatprep.subr.mxu0 0.0
        %308 = vmatpush1.msra.mxu0 %v266
        %309 = vmatprep.subr.mxu0 0.0
        %310 = vmatpush1.msra.mxu0 %v267
        %311 = vmatprep.subr.mxu0 0.0
        %312 = vmatpush1.msra.mxu0 0.0
        %313 = vmatprep.subr.mxu0 0.0
        %314 = vmatpush1.msra.mxu0 0.0
        %315 = vmatprep.subr.mxu0 0.0
        %316 = vmatpush1.msra.mxu0 0.0
        %317 = vmatprep.subr.mxu0 0.0
        %318 = vmatpush1.msra.mxu0 0.0
        %319 = vmatprep.subr.mxu0 0.0
        %320 = vmatpush1.msra.mxu0 0.0
        %321 = vmatprep.subr.mxu0 0.0
        %322 = vmatpush1.msra.mxu0 0.0
        %323 = vmatprep.subr.mxu0 0.0
        %324 = vmatpush1.msra.mxu0 0.0
        %325 = vmatprep.subr.mxu0 0.0
        %326 = vmatpush1.msra.mxu0 0.0
        %327 = vmatprep.subr.mxu0 0.0
        %328 = vmatpush1.msra.mxu0 0.0
        %329 = vmatprep.subr.mxu0 0.0
        %330 = vmatpush1.msra.mxu0 0.0
        %331 = vmatprep.subr.mxu0 0.0
        %332 = vmatpush1.msra.mxu0 0.0
        %333 = vmatprep.subr.mxu0 0.0
        %334 = vmatpush1.msra.mxu0 0.0
        %335 = vmatprep.subr.mxu0 0.0
        %336 = vmatpush1.msra.mxu0 0.0
        %337 = vmatprep.subr.mxu0 0.0
        %338 = vmatpush1.msra.mxu0 0.0
        %339 = vmatprep.subr.mxu0 0.0
        %340 = vmatpush1.msra.mxu0 0.0
        %341 = vmatprep.subr.mxu0 0.0
        %342 = vmatpush1.msra.mxu0 0.0
        %343 = vmatprep.subr.mxu0 0.0
        %344 = vmatpush1.msra.mxu0 0.0
        %345 = vmatprep.subr.mxu0 0.0
        %346 = vmatpush1.msra.mxu0 0.0
        %347 = vmatprep.subr.mxu0 0.0
        %348 = vmatpush1.msra.mxu0 0.0
        %349 = vmatprep.subr.mxu0 0.0
        %350 = vmatpush1.msra.mxu0 0.0
        %351 = vmatprep.subr.mxu0 0.0
        %352 = vmatpush1.msra.mxu0 0.0
        %353 = vmatprep.subr.mxu0 0.0
        %354 = vmatpush1.msra.mxu0 0.0
        %355 = vmatprep.subr.mxu0 0.0
        %356 = vmatpush1.msra.mxu0 0.0
        %357 = vmatprep.subr.mxu0 0.0
        %358 = vmatpush1.msra.mxu0 0.0
        %359 = vmatprep.subr.mxu0 0.0
        %360 = vmatpush1.msra.mxu0 0.0
        %361 = vmatprep.subr.mxu0 0.0
        %362 = vmatpush1.msra.mxu0 0.0
        %363 = vmatprep.subr.mxu0 0.0
        %364 = vmatpush1.msra.mxu0 0.0
        %365 = vmatprep.subr.mxu0 0.0
        %366 = vmatpush1.msra.mxu0 0.0
        %367 = vmatprep.mubr.f32.mxu0 0.0
        %368 = vmatmul.mubr.f32.gmra.mrb[0].mxu0 %v301
        %v369 = vpop.f32.mrb[0].mxu0
        %v370 = vadd.f32 %v268, %v369
        %v371 = vpop.f32.mrb[0].mxu0
        %372 = vdwg.mxu0
        %v373 = vmax.f32 %v370, 0.0
        %v374 = vld [vmem:[%s3] sm:$0x3]
        %v375 = vld [vmem:[%s4] sm:$0x1]
        %vm376 = vcmask 15360
        %v378 = vsel %vm376, %v373, 0
        %vm380 = vcmask 1041408
        %v382 = vsel %vm380, %v374, 0
        %384 = vmatprep.subr.mxu0 0.0
        %385 = vmatpush1.msra.mxu0 %v382
        %386 = vmatprep.subr.mxu0 0.0
        %387 = vmatpush1.msra.mxu0 0.0
        %388 = vmatprep.subr.mxu0 0.0
        %389 = vmatpush1.msra.mxu0 0.0
        %390 = vmatprep.subr.mxu0 0.0
        %391 = vmatpush1.msra.mxu0 0.0
        %392 = vmatprep.subr.mxu0 0.0
        %393 = vmatpush1.msra.mxu0 0.0
        %394 = vmatprep.subr.mxu0 0.0
        %395 = vmatpush1.msra.mxu0 0.0
        %396 = vmatprep.subr.mxu0 0.0
        %397 = vmatpush1.msra.mxu0 0.0
        %398 = vmatprep.subr.mxu0 0.0
        %399 = vmatpush1.msra.mxu0 0.0
        %400 = vmatprep.subr.mxu0 0.0
        %401 = vmatpush1.msra.mxu0 0.0
        %402 = vmatprep.subr.mxu0 0.0
        %403 = vmatpush1.msra.mxu0 0.0
        %404 = vmatprep.subr.mxu0 0.0
        %405 = vmatpush1.msra.mxu0 0.0
        %406 = vmatprep.subr.mxu0 0.0
        %407 = vmatpush1.msra.mxu0 0.0
        %408 = vmatprep.subr.mxu0 0.0
        %409 = vmatpush1.msra.mxu0 0.0
        %410 = vmatprep.subr.mxu0 0.0
        %411 = vmatpush1.msra.mxu0 0.0
        %412 = vmatprep.subr.mxu0 0.0
        %413 = vmatpush1.msra.mxu0 0.0
        %414 = vmatprep.subr.mxu0 0.0
        %415 = vmatpush1.msra.mxu0 0.0
        %416 = vmatprep.subr.mxu0 0.0
        %417 = vmatpush1.msra.mxu0 0.0
        %418 = vmatprep.subr.mxu0 0.0
        %419 = vmatpush1.msra.mxu0 0.0
        %420 = vmatprep.subr.mxu0 0.0
        %421 = vmatpush1.msra.mxu0 0.0
        %422 = vmatprep.subr.mxu0 0.0
        %423 = vmatpush1.msra.mxu0 0.0
        %424 = vmatprep.subr.mxu0 0.0
        %425 = vmatpush1.msra.mxu0 0.0
        %426 = vmatprep.subr.mxu0 0.0
        %427 = vmatpush1.msra.mxu0 0.0
        %428 = vmatprep.subr.mxu0 0.0
        %429 = vmatpush1.msra.mxu0 0.0
        %430 = vmatprep.subr.mxu0 0.0
        %431 = vmatpush1.msra.mxu0 0.0
        %432 = vmatprep.subr.mxu0 0.0
        %433 = vmatpush1.msra.mxu0 0.0
        %434 = vmatprep.subr.mxu0 0.0
        %435 = vmatpush1.msra.mxu0 0.0
        %436 = vmatprep.subr.mxu0 0.0
        %437 = vmatpush1.msra.mxu0 0.0
        %438 = vmatprep.subr.mxu0 0.0
        %439 = vmatpush1.msra.mxu0 0.0
        %440 = vmatprep.subr.mxu0 0.0
        %441 = vmatpush1.msra.mxu0 0.0
        %442 = vmatprep.subr.mxu0 0.0
        %443 = vmatpush1.msra.mxu0 0.0
        %444 = vmatprep.subr.mxu0 0.0
        %445 = vmatpush1.msra.mxu0 0.0
        %446 = vmatprep.subr.mxu0 0.0
        %447 = vmatpush1.msra.mxu0 0.0
        %448 = vmatprep.mubr.f32.mxu0 0.0
        %449 = vmatmul.mubr.f32.gmra.mrb[0].mxu0 %v378
        %v450 = vpop.f32.mrb[0].mxu0
        %v451 = vadd.f32 %v375, %v450
        %v452 = vpop.f32.mrb[0].mxu0
        %453 = vdwg.mxu0
        %v454 = vxor.u32 %v451, 2147483648
        %v455 = vmul.f32 %v454, 1.442695
        %v456 = vpow.pop %v455
        %v457 = vadd.f32 %v456, 1.0
        %v458 = vrcp.pop %v457
        %v459 = vmul.f32 1.0, %v458
        %v460 = vlaneseq
        %v461 = vshrl.u32 %v460, 7
        %v462 = vsub.s32 0, %v461
        %v463 = vrot.slane %v459, %v462
        %465 = vbcast.lane.b32.xlu0 %v463, 256
        %v466 = vpop.permute.xlu0 %465
        %s468 = sor.u32 256, 8
        %469 = vbcast.lane.b32.xlu0 %v463, %s468
        %v470 = vpop.permute.xlu0 %469
        %s472 = sor.u32 256, 16
        %473 = vbcast.lane.b32.xlu0 %v463, %s472
        %v474 = vpop.permute.xlu0 %473
        %s476 = sor.u32 256, 24
        %477 = vbcast.lane.b32.xlu0 %v463, %s476
        %v478 = vpop.permute.xlu0 %477
        %v479 = vmul.f32 %v243, %v466
        %v480 = vmul.f32 %v244, %v470
        %v481 = vmul.f32 %v245, %v474
        %v482 = vmul.f32 %v246, %v478
        %483 = vst.msk [vmem:[%s242] sm:$0xff] %vm247, %v479
        %484 = vst.msk [vmem:[%s242 + $0x8] sm:$0xff] %vm247, %v480
        %485 = vst.msk [vmem:[%s242 + $0x10] sm:$0xff] %vm247, %v481
        %486 = vst.msk [vmem:[%s242 + $0x18] sm:$0xff] %vm247, %v482
        %s487 = sand.u32 %s140, 1
        %s488 = scalar_lea.sflag [#allocation4], %s487
        %s489 = sand.u32 %s140, 1
        %s490 = smul.addr %s489, 32
        %s491 = scalar_lea.vmem [#allocation5], %s490
        // Predicated region
        $region45: #{tpu_custom_call.1} parent=39 // pred_check
          %p492 = pneg %p150
        $region46: #{tpu_custom_call.1} parent=39 // pred_check_branch
          %494 = sbr.rel (%p492) target = $region48
        $region47: #{tpu_custom_call.1} parent=39 // pred_region
          %s496 = ssub.s32 512, 512
          %497 = vsyncadd %s488, %s496
          %s498 = smul.addr %s22, 4
          %s499 = smul.addr %s498, 128
          %s500 = scalar_lea.hbm %s5, %s499
          %s501 = sshll.u32 %s491, 4
          %s502 = int_to_ptr.vmem [resolvable:$true] %s501
          %507 = dma.vmem_to_hbm [thread:$0]  %s502, 512, %s500, %s488, 128, 128, 8
        $region48: #{tpu_custom_call.1} parent=39 // pred_fallthru
          _
      $region40: #{tpu_custom_call.1} parent=5 // pred_fallthru
        _
      %p508 = scmp.le.s32.totalorder 2, %s17
      // Predicated region
      $region49: #{tpu_custom_call.1} parent=5 // pred_check
        %p509 = pneg %p508
      $region50: #{tpu_custom_call.1} parent=5 // pred_check_branch
        %511 = sbr.rel (%p509) target = $region52
      $region51: #{tpu_custom_call.1} parent=5 // pred_region
        %s512 = ssub.s32 %s17, 2
        // Predicated region
        $region53: #{tpu_custom_call.1} parent=51 // pred_check
          %p513 = pneg %p156
        $region54: #{tpu_custom_call.1} parent=51 // pred_check_branch
          %515 = sbr.rel (%p513) target = $region56
        $region55: #{tpu_custom_call.1} parent=51 // pred_region
          %s516 = sand.u32 %s141, 1
          %s517 = scalar_lea.sflag [#allocation4], %s516
          %s518 = sand.u32 %s141, 1
          %s519 = smul.addr %s518, 32
          %s520 = scalar_lea.vmem [#allocation5], %s519
          %521 = dma.done %s517, 512
        $region56: #{tpu_custom_call.1} parent=51 // pred_fallthru
          _
      $region52: #{tpu_custom_call.1} parent=5 // pred_fallthru
        _
    $region6: #{tpu_custom_call.1} parent=1 // loop_footer
      %s21 = sadd.s32 1, %s17
    $region7: #{tpu_custom_call.1} parent=1 // loop_footer_branch
      %16 = sbr.rel target = $region3
    $region8: #{tpu_custom_call.1} parent=1 // loop_exit
      _
    %522 = vsyncpa [#allocation3], 1
    %s523 = scalar_lea.sflag [#allocation3], 1
    %524 = vsyncpa %s523, 1
    %525 = vsyncpa [#allocation4], 1
    %s526 = scalar_lea.sflag [#allocation4], 1
    %527 = vsyncpa %s526, 1

</llo_original>
